<compile_context>
chip_gen: v5e
topology: v5e:2x2
jax: 0.10.0
libtpu: 0.0.40
codegen_flags: <defaults>
</compile_context>

<pallas_src>
import numpy as np
import jax
import jax.numpy as jnp
from jax import lax
from jax.experimental import pallas as pl
from jax.experimental.pallas import tpu as pltpu

# ---------------- model hyper-params (match module defaults) ----------------
VOCAB_SIZE = 32
EMBED_DIM = 128
HIDDEN_DIM = 256
NUM_COLORS = 3
GRID_SIZE = 5
GG = GRID_SIZE * GRID_SIZE                 # 25 grid positions
OUT_DIM = GG * NUM_COLORS                  # 75 (PyTorch fc3 out_features)
LANE = 128                                 # one vreg lane stripe
OUT_PAD = NUM_COLORS * LANE                # 384 (LUT-builder internal layout)


def _round_up(x, m):
    return (x + m - 1) // m * m


# ----------------- one-shot LUT builder kernel (full fused MLP) --------------
def _lut_builder_kernel(emb_ref, w1_ref, b1_ref, w2_ref, b2_ref,
                        w3_ref, b3_ref, out_ref):
    # emb: (V, E)   w1: (E, H)  b1: (1, H)   w2: (H, H)  b2: (1, H)
    # w3: (H, 3*128) color-major lane-padded   b3: (1, 3*128)
    # out: (V, 3*128) softmax probabilities, color-major lane-padded.
    x = emb_ref[...]                                              # (V, E) f32

    h1 = jnp.dot(x, w1_ref[...], preferred_element_type=jnp.float32) + b1_ref[...]
    h1 = jnp.maximum(h1, 0.0)

    h2 = jnp.dot(h1, w2_ref[...], preferred_element_type=jnp.float32) + b2_ref[...]
    h2 = jnp.maximum(h2, 0.0)

    logits = jnp.dot(h2, w3_ref[...], preferred_element_type=jnp.float32) + b3_ref[...]

    # softmax over colors: three full 128-lane stripes (no cross-lane reduce)
    c0 = logits[:, 0 * LANE:1 * LANE]
    c1 = logits[:, 1 * LANE:2 * LANE]
    c2 = logits[:, 2 * LANE:3 * LANE]
    m = jnp.maximum(jnp.maximum(c0, c1), c2)
    e0 = jnp.exp(c0 - m)
    e1 = jnp.exp(c1 - m)
    e2 = jnp.exp(c2 - m)
    inv = 1.0 / (e0 + e1 + e2)              # exact divide (tolerance-critical)
    out_ref[:, 0 * LANE:1 * LANE] = e0 * inv
    out_ref[:, 1 * LANE:2 * LANE] = e1 * inv
    out_ref[:, 2 * LANE:3 * LANE] = e2 * inv


# -------------------- one-time parameter preparation -------------------------
def prepare_params(params):
    """Fold the entire forward into a (VOCAB_SIZE, 128) probability LUT.

    Lanes 0:75 of each LUT row hold the softmax probabilities in PyTorch
    column order (position-major, color fastest); lanes 75:127 are zero.
    """
    emb_table, w1, b1, w2, b2, w3, b3 = params

    # fc3 column j corresponds to (position p=j//3, color c=j%3).  Color-major
    # lane-padded layout so the in-kernel softmax uses full-lane stripes.
    w3p = jnp.zeros((HIDDEN_DIM, OUT_PAD), jnp.float32)
    b3p = jnp.zeros((1, OUT_PAD), jnp.float32)
    for c in range(NUM_COLORS):
        w3p = w3p.at[:, c * LANE:c * LANE + GG].set(w3[:, c::NUM_COLORS])
        b3p = b3p.at[:, c * LANE:c * LANE + GG].set(b3[:, c::NUM_COLORS])

    const2 = lambda i: (0, 0)
    probs_cm = pl.pallas_call(
        _lut_builder_kernel,
        out_shape=jax.ShapeDtypeStruct((VOCAB_SIZE, OUT_PAD), jnp.float32),
        grid=(1,),
        in_specs=[
            pl.BlockSpec((VOCAB_SIZE, EMBED_DIM), const2),        # emb table
            pl.BlockSpec((EMBED_DIM, HIDDEN_DIM), const2),        # w1
            pl.BlockSpec((1, HIDDEN_DIM), const2),                # b1
            pl.BlockSpec((HIDDEN_DIM, HIDDEN_DIM), const2),       # w2
            pl.BlockSpec((1, HIDDEN_DIM), const2),                # b2
            pl.BlockSpec((HIDDEN_DIM, OUT_PAD), const2),          # w3 (cm)
            pl.BlockSpec((1, OUT_PAD), const2),                   # b3 (cm)
        ],
        out_specs=pl.BlockSpec((VOCAB_SIZE, OUT_PAD), const2),
    )(emb_table.astype(jnp.float32),
      w1.astype(jnp.float32), b1.astype(jnp.float32),
      w2.astype(jnp.float32), b2.astype(jnp.float32),
      w3p, b3p)

    # One-time repack: color-major stripes -> PyTorch order in one 128-lane
    # stripe: lut[v, p*3 + c] = probs_cm[v, c*128 + p].
    probs = probs_cm.reshape(VOCAB_SIZE, NUM_COLORS, LANE)[:, :, :GG]  # (V,3,25)
    probs = jnp.transpose(probs, (0, 2, 1)).reshape(VOCAB_SIZE, OUT_DIM)
    lut = jnp.zeros((VOCAB_SIZE, LANE), jnp.float32).at[:, :OUT_DIM].set(probs)
    return lut


# --------------------------- per-call lookup kernel ---------------------------
def _lookup_kernel(ids_ref, lut_ref, out_ref):
    # ids: (TB, 1) int32   lut: (V, 128) f32   out: (TB, 128) f32
    tb = ids_ref.shape[0]
    ids = ids_ref[...]                                            # (TB, 1) i32
    iota = lax.broadcasted_iota(jnp.int32, (tb, VOCAB_SIZE), 1)   # (TB, V)
    onehot = (iota == ids).astype(jnp.float32)                    # (TB, V)
    # Single small MXU matmul selects the LUT row; lane-dense unmasked store.
    out_ref[...] = jnp.dot(onehot, lut_ref[...],
                           preferred_element_type=jnp.float32)


# ------------------------------ wrapper --------------------------------------
def learnable_encoder_forward(token_ids, lut, tile_b=None):
    """token_ids: int32 [B] -> probs: float32 [B, GRID, GRID, NUM_COLORS]."""
    B = token_ids.shape[0]

    # Tile selection: multiple of 8, cap 1024, and split the batch so that
    # moderate/large B yields >= 2 grid steps (lets v7x's second TensorCore
    # take half the batch via dimension_semantics=("parallel",)).
    if tile_b is None:
        base = _round_up(max(B, 1), 8)
        tile_b = max(8, min(1024, _round_up((base + 1) // 2, 8)))
    tile_b = _round_up(max(tile_b, 8), 8)
    B_pad = _round_up(B, tile_b)

    ids = token_ids.astype(jnp.int32)
    if B_pad != B:
        ids = jnp.pad(ids, (0, B_pad - B))          # pad with valid id 0
    ids2d = ids.reshape(B_pad, 1)

    grid = (B_pad // tile_b,)
    cost = pl.CostEstimate(
        flops=2 * B_pad * VOCAB_SIZE * LANE,
        transcendentals=0,
        bytes_accessed=(4 * B_pad                    # token ids
                        + 4 * VOCAB_SIZE * LANE      # LUT (resident)
                        + 4 * B_pad * LANE))         # output stripe

    out = pl.pallas_call(
        _lookup_kernel,
        out_shape=jax.ShapeDtypeStruct((B_pad, LANE), jnp.float32),
        grid=grid,
        in_specs=[
            pl.BlockSpec((tile_b, 1), lambda i: (i, 0)),           # ids
            pl.BlockSpec((VOCAB_SIZE, LANE), lambda i: (0, 0)),    # LUT
        ],
        out_specs=pl.BlockSpec((tile_b, LANE), lambda i: (i, 0)),
        compiler_params=pltpu.CompilerParams(
            dimension_semantics=("parallel",)),   # v7x: shard batch over 2 TCs
        cost_estimate=cost,
    )(ids2d, lut)

    # Drop batch padding + padded lanes; PyTorch [B, grid, grid, colors] order
    # falls out of a plain reshape (no transpose needed).
    probs = out[:B, :OUT_DIM].reshape(B, GRID_SIZE, GRID_SIZE, NUM_COLORS)
    return probs


# ------------------------- deterministic param init --------------------------
def init_params(key):
    k_emb, k1, k2, k3 = jax.random.split(key, 4)

    def xavier_uniform(k, fan_in, fan_out):
        bound = np.sqrt(6.0 / (fan_in + fan_out))
        return jax.random.uniform(k, (fan_in, fan_out), jnp.float32, -bound, bound)

    emb_table = 0.02 * jax.random.normal(k_emb, (VOCAB_SIZE, EMBED_DIM), jnp.float32)
    w1 = xavier_uniform(k1, EMBED_DIM, HIDDEN_DIM)
    w2 = xavier_uniform(k2, HIDDEN_DIM, HIDDEN_DIM)
    w3 = xavier_uniform(k3, HIDDEN_DIM, OUT_DIM)
    b1 = jnp.zeros((1, HIDDEN_DIM), jnp.float32)
    b2 = jnp.zeros((1, HIDDEN_DIM), jnp.float32)
    b3 = jnp.zeros((1, OUT_DIM), jnp.float32)
    return (emb_table, w1, b1, w2, b2, w3, b3)


# ------------------------------ reference (JAX) -------------------------------
def reference_forward(token_ids, params):
    emb_table, w1, b1, w2, b2, w3, b3 = params
    x = jnp.take(emb_table, token_ids, axis=0)
    x = jax.nn.relu(x @ w1 + b1)
    x = jax.nn.relu(x @ w2 + b2)
    x = x @ w3 + b3
    x = x.reshape(token_ids.shape[0], GRID_SIZE, GRID_SIZE, NUM_COLORS)
    return jax.nn.softmax(x, axis=-1)


# TODO(synk): sample_patterns()/encode() (categorical sampling) are host-side
# utilities of the module and are not part of the fused forward kernel.

if __name__ == "__main__":
    key = jax.random.PRNGKey(0)
    k_params, k_tok = jax.random.split(key)

    params = init_params(k_params)

    # One-time: fold embedding + fc1/fc2/fc3 + softmax into a 32x128 LUT
    # (built by the Pallas MLP kernel over the whole vocabulary).
    lut = jax.block_until_ready(prepare_params(params))
    assert lut.shape == (VOCAB_SIZE, LANE)

    # --- small batch, single grid step ---------------------------------------
    batch = 8
    token_ids = jax.random.randint(k_tok, (batch,), 0, VOCAB_SIZE, dtype=jnp.int32)
    probs = jax.block_until_ready(learnable_encoder_forward(token_ids, lut))
    ref = jax.block_until_ready(reference_forward(token_ids, params))
    assert probs.shape == (batch, GRID_SIZE, GRID_SIZE, NUM_COLORS)
    assert np.allclose(np.asarray(probs).sum(-1), 1.0, atol=1e-5)
    assert np.allclose(np.asarray(probs), np.asarray(ref), atol=1e-5)

    # --- multi-tile grid + batch padding path ---------------------------------
    batch2 = 37
    tok2 = jax.random.randint(jax.random.PRNGKey(7), (batch2,), 0, VOCAB_SIZE,
                              dtype=jnp.int32)
    probs2 = jax.block_until_ready(
        learnable_encoder_forward(tok2, lut, tile_b=16))
    ref2 = jax.block_until_ready(reference_forward(tok2, params))
    assert probs2.shape == (batch2, GRID_SIZE, GRID_SIZE, NUM_COLORS)
    assert np.allclose(np.asarray(probs2), np.asarray(ref2), atol=1e-5)

    # --- default tile selection: moderate batch gets >= 2 grid steps ---------
    batch3 = 64
    tok3 = jax.random.randint(jax.random.PRNGKey(11), (batch3,), 0, VOCAB_SIZE,
                              dtype=jnp.int32)
    probs3 = jax.block_until_ready(learnable_encoder_forward(tok3, lut))
    ref3 = jax.block_until_ready(reference_forward(tok3, params))
    assert np.allclose(np.asarray(probs3), np.asarray(ref3), atol=1e-5)

    print("KERNEL_OK")
</pallas_src>

<mosaic_0001>
module attributes {stable_mosaic.version = 11 : i64} {
  func.func @_lut_builder_kernel(%arg0: i32, %arg1: memref<32x128xf32, #tpu.memory_space<vmem>>, %arg2: memref<128x256xf32, #tpu.memory_space<vmem>>, %arg3: memref<1x256xf32, #tpu.memory_space<vmem>>, %arg4: memref<256x256xf32, #tpu.memory_space<vmem>>, %arg5: memref<1x256xf32, #tpu.memory_space<vmem>>, %arg6: memref<256x384xf32, #tpu.memory_space<vmem>>, %arg7: memref<1x384xf32, #tpu.memory_space<vmem>>, %arg8: memref<32x384xf32, #tpu.memory_space<vmem>>) attributes {dimension_semantics = [#tpu.dimension_semantics<arbitrary>], iteration_bounds = array<i64: 1>, scalar_prefetch = 0 : i64, scratch_operands = 0 : i64, tpu.core_type = #tpu.core_type<tc>, window_params = [{pipeline_mode = #tpu.pipeline_mode<synchronous>, transform_indices = @transform_0, window_bounds = array<i64: 32, 128>}, {pipeline_mode = #tpu.pipeline_mode<synchronous>, transform_indices = @transform_1, window_bounds = array<i64: 128, 256>}, {pipeline_mode = #tpu.pipeline_mode<synchronous>, transform_indices = @transform_2, window_bounds = array<i64: 1, 256>}, {pipeline_mode = #tpu.pipeline_mode<synchronous>, transform_indices = @transform_3, window_bounds = array<i64: 256, 256>}, {pipeline_mode = #tpu.pipeline_mode<synchronous>, transform_indices = @transform_4, window_bounds = array<i64: 1, 256>}, {pipeline_mode = #tpu.pipeline_mode<synchronous>, transform_indices = @transform_5, window_bounds = array<i64: 256, 384>}, {pipeline_mode = #tpu.pipeline_mode<synchronous>, transform_indices = @transform_6, window_bounds = array<i64: 1, 384>}, {pipeline_mode = #tpu.pipeline_mode<synchronous>, transform_indices = @transform_7, window_bounds = array<i64: 32, 384>}]} {
    %c0 = arith.constant 0 : index
    %c0_0 = arith.constant 0 : index
    %0 = vector.load %arg1[%c0, %c0_0] : memref<32x128xf32, #tpu.memory_space<vmem>>, vector<32x128xf32>
    %c0_1 = arith.constant 0 : index
    %c0_2 = arith.constant 0 : index
    %1 = vector.load %arg2[%c0_1, %c0_2] : memref<128x256xf32, #tpu.memory_space<vmem>>, vector<128x256xf32>
    %cst = arith.constant dense<0.000000e+00> : vector<32x256xf32>
    %2 = tpu.matmul %0, %1, %cst {dimension_numbers = #tpu.dot_dimension_numbers<[1], [0], [0], [1], [0, 0, 1, 1], [], []>} : vector<32x128xf32>, vector<128x256xf32>, vector<32x256xf32> -> vector<32x256xf32>
    %c0_3 = arith.constant 0 : index
    %c0_4 = arith.constant 0 : index
    %3 = vector.load %arg3[%c0_3, %c0_4] : memref<1x256xf32, #tpu.memory_space<vmem>>, vector<1x256xf32>
    %4 = vector.broadcast %3 : vector<1x256xf32> to vector<32x256xf32>
    %5 = arith.addf %2, %4 : vector<32x256xf32>
    %cst_5 = arith.constant 0.000000e+00 : f32
    %6 = vector.broadcast %cst_5 : f32 to vector<32x256xf32>
    %7 = arith.maximumf %5, %6 : vector<32x256xf32>
    %c0_6 = arith.constant 0 : index
    %c0_7 = arith.constant 0 : index
    %8 = vector.load %arg4[%c0_6, %c0_7] : memref<256x256xf32, #tpu.memory_space<vmem>>, vector<256x256xf32>
    %cst_8 = arith.constant dense<0.000000e+00> : vector<32x256xf32>
    %9 = tpu.matmul %7, %8, %cst_8 {dimension_numbers = #tpu.dot_dimension_numbers<[1], [0], [0], [1], [0, 0, 1, 1], [], []>} : vector<32x256xf32>, vector<256x256xf32>, vector<32x256xf32> -> vector<32x256xf32>
    %c0_9 = arith.constant 0 : index
    %c0_10 = arith.constant 0 : index
    %10 = vector.load %arg5[%c0_9, %c0_10] : memref<1x256xf32, #tpu.memory_space<vmem>>, vector<1x256xf32>
    %11 = vector.broadcast %10 : vector<1x256xf32> to vector<32x256xf32>
    %12 = arith.addf %9, %11 : vector<32x256xf32>
    %cst_11 = arith.constant 0.000000e+00 : f32
    %13 = vector.broadcast %cst_11 : f32 to vector<32x256xf32>
    %14 = arith.maximumf %12, %13 : vector<32x256xf32>
    %c0_12 = arith.constant 0 : index
    %c0_13 = arith.constant 0 : index
    %15 = vector.load %arg6[%c0_12, %c0_13] : memref<256x384xf32, #tpu.memory_space<vmem>>, vector<256x384xf32>
    %cst_14 = arith.constant dense<0.000000e+00> : vector<32x384xf32>
    %16 = tpu.matmul %14, %15, %cst_14 {dimension_numbers = #tpu.dot_dimension_numbers<[1], [0], [0], [1], [0, 0, 1, 1], [], []>} : vector<32x256xf32>, vector<256x384xf32>, vector<32x384xf32> -> vector<32x384xf32>
    %c0_15 = arith.constant 0 : index
    %c0_16 = arith.constant 0 : index
    %17 = vector.load %arg7[%c0_15, %c0_16] : memref<1x384xf32, #tpu.memory_space<vmem>>, vector<1x384xf32>
    %18 = vector.broadcast %17 : vector<1x384xf32> to vector<32x384xf32>
    %19 = arith.addf %16, %18 : vector<32x384xf32>
    %20 = vector.extract_strided_slice %19 {offsets = [0, 0], sizes = [32, 128], strides = [1, 1]} : vector<32x384xf32> to vector<32x128xf32>
    %21 = vector.extract_strided_slice %19 {offsets = [0, 128], sizes = [32, 128], strides = [1, 1]} : vector<32x384xf32> to vector<32x128xf32>
    %22 = vector.extract_strided_slice %19 {offsets = [0, 256], sizes = [32, 128], strides = [1, 1]} : vector<32x384xf32> to vector<32x128xf32>
    %23 = arith.maximumf %20, %21 : vector<32x128xf32>
    %24 = arith.maximumf %23, %22 : vector<32x128xf32>
    %25 = arith.subf %20, %24 : vector<32x128xf32>
    %26 = math.exp %25 : vector<32x128xf32>
    %27 = arith.subf %21, %24 : vector<32x128xf32>
    %28 = math.exp %27 : vector<32x128xf32>
    %29 = arith.subf %22, %24 : vector<32x128xf32>
    %30 = math.exp %29 : vector<32x128xf32>
    %31 = arith.addf %26, %28 : vector<32x128xf32>
    %32 = arith.addf %31, %30 : vector<32x128xf32>
    %cst_17 = arith.constant 1.000000e+00 : f32
    %33 = vector.broadcast %cst_17 : f32 to vector<32x128xf32>
    %34 = arith.divf %33, %32 : vector<32x128xf32>
    %35 = arith.mulf %26, %34 : vector<32x128xf32>
    %c0_18 = arith.constant 0 : index
    %c0_19 = arith.constant 0 : index
    %36 = vector.load %arg8[%c0_18, %c0_19] : memref<32x384xf32, #tpu.memory_space<vmem>>, vector<32x128xf32>
    tpu.vector_store %arg8[%c0_18, %c0_19], %35 {strides = array<i32>} : memref<32x384xf32, #tpu.memory_space<vmem>>, vector<32x128xf32>,
    %37 = arith.mulf %28, %34 : vector<32x128xf32>
    %c0_20 = arith.constant 0 : index
    %c128 = arith.constant 128 : index
    %38 = vector.load %arg8[%c0_20, %c128] : memref<32x384xf32, #tpu.memory_space<vmem>>, vector<32x128xf32>
    tpu.vector_store %arg8[%c0_20, %c128], %37 {strides = array<i32>} : memref<32x384xf32, #tpu.memory_space<vmem>>, vector<32x128xf32>,
    %39 = arith.mulf %30, %34 : vector<32x128xf32>
    %c0_21 = arith.constant 0 : index
    %c256 = arith.constant 256 : index
    %40 = vector.load %arg8[%c0_21, %c256] : memref<32x384xf32, #tpu.memory_space<vmem>>, vector<32x128xf32>
    tpu.vector_store %arg8[%c0_21, %c256], %39 {strides = array<i32>} : memref<32x384xf32, #tpu.memory_space<vmem>>, vector<32x128xf32>,
    return
  }
  func.func @transform_0(%arg0: i32) -> (i32, i32) {
    %c0_i32 = arith.constant 0 : i32
    %c0_i32_0 = arith.constant 0 : i32
    %c0_i32_1 = arith.constant 0 : i32
    return %c0_i32, %c0_i32_0 : i32, i32
  }
  func.func @transform_1(%arg0: i32) -> (i32, i32) {
    %c0_i32 = arith.constant 0 : i32
    %c0_i32_0 = arith.constant 0 : i32
    %c0_i32_1 = arith.constant 0 : i32
    return %c0_i32, %c0_i32_0 : i32, i32
  }
  func.func @transform_2(%arg0: i32) -> (i32, i32) {
    %c0_i32 = arith.constant 0 : i32
    %c0_i32_0 = arith.constant 0 : i32
    %c0_i32_1 = arith.constant 0 : i32
    return %c0_i32, %c0_i32_0 : i32, i32
  }
  func.func @transform_3(%arg0: i32) -> (i32, i32) {
    %c0_i32 = arith.constant 0 : i32
    %c0_i32_0 = arith.constant 0 : i32
    %c0_i32_1 = arith.constant 0 : i32
    return %c0_i32, %c0_i32_0 : i32, i32
  }
  func.func @transform_4(%arg0: i32) -> (i32, i32) {
    %c0_i32 = arith.constant 0 : i32
    %c0_i32_0 = arith.constant 0 : i32
    %c0_i32_1 = arith.constant 0 : i32
    return %c0_i32, %c0_i32_0 : i32, i32
  }
  func.func @transform_5(%arg0: i32) -> (i32, i32) {
    %c0_i32 = arith.constant 0 : i32
    %c0_i32_0 = arith.constant 0 : i32
    %c0_i32_1 = arith.constant 0 : i32
    return %c0_i32, %c0_i32_0 : i32, i32
  }
  func.func @transform_6(%arg0: i32) -> (i32, i32) {
    %c0_i32 = arith.constant 0 : i32
    %c0_i32_0 = arith.constant 0 : i32
    %c0_i32_1 = arith.constant 0 : i32
    return %c0_i32, %c0_i32_0 : i32, i32
  }
  func.func @transform_7(%arg0: i32) -> (i32, i32) {
    %c0_i32 = arith.constant 0 : i32
    %c0_i32_0 = arith.constant 0 : i32
    %c0_i32_1 = arith.constant 0 : i32
    return %c0_i32, %c0_i32_0 : i32, i32
  }
}

</mosaic_0001>

<llo_original>
// kernel: tpu_custom_call.1
$region0: #{tpu_custom_call.1}
  #allocation0 [shape = 'u32[]', space=smem, size = 0x4, offset = 0x4, fixed_abs, tag = 'smem constant byte address 0x4 - core index']
  #allocation1 [shape = 'u32[72,128]{1,0:T(1,128)}', space=vmem, size = 0x9000, scoped, tag = 'internal scratch']
  %s0 = inlined_call_operand.hbm [shape: f32[32,128], index: 0, kind: input, shape index: {}]
  %s1 = inlined_call_operand.hbm [shape: f32[128,256], index: 1, kind: input, shape index: {}]
  %s2 = inlined_call_operand.hbm [shape: f32[1,256], index: 2, kind: input, shape index: {}]
  %s3 = inlined_call_operand.hbm [shape: f32[256,256], index: 3, kind: input, shape index: {}]
  %s4 = inlined_call_operand.vmem [shape: f32[1,256], index: 4, kind: input, shape index: {}]
  %s5 = inlined_call_operand.hbm [shape: f32[256,384], index: 5, kind: input, shape index: {}]
  %s6 = inlined_call_operand.vmem [shape: f32[1,384], index: 6, kind: input, shape index: {}]
  %s7 = inlined_call_operand.hbm [shape: f32[32,384], index: 7, kind: output, shape index: {}]
  %s8 = sld [smem:[#allocation0]]
  $region58: #{tpu_custom_call.1} parent=0
    _
  %s10 = ssub.s32 1, %s8
  %s11 = scalar_select 0, %s10, %s8
  $region1: #{tpu_custom_call.1} parent=0
    #allocation2 [shape = 'u8[16384]{0}', space=vmem, size = 0x4000, scoped, tag = 'input window, operand 0, single buffered']
    #allocation3 [shape = 's32[1]{0}', space=sflag, size = 0x4, scoped, tag = 'scoped memory for tpu_custom_call.1']
    #allocation4 [shape = 's32[1]{0}', space=sflag, size = 0x4, scoped, tag = 'scoped memory for tpu_custom_call.1']
    #allocation5 [shape = 'u8[131072]{0}', space=vmem, size = 0x20000, scoped, tag = 'input window, operand 1, single buffered']
    #allocation6 [shape = 's32[1]{0}', space=sflag, size = 0x4, scoped, tag = 'scoped memory for tpu_custom_call.1']
    #allocation7 [shape = 'u8[1024]{0}', space=vmem, size = 0x400, scoped, tag = 'input window, operand 2, single buffered']
    #allocation8 [shape = 'u8[262144]{0}', space=vmem, size = 0x40000, scoped, tag = 'input window, operand 3, single buffered']
    #allocation9 [shape = 's32[1]{0}', space=sflag, size = 0x4, scoped, tag = 'scoped memory for tpu_custom_call.1']
    #allocation10 [shape = 'u8[393216]{0}', space=vmem, size = 0x60000, scoped, tag = 'input window, operand 5, single buffered']
    #allocation11 [shape = 'u8[49152]{0}', space=vmem, size = 0xc000, scoped, tag = 'output window, operand 0, single buffered']
    %12 = vsyncpa [#allocation3], 0
    %13 = vsyncpa [#allocation6], 0
    %14 = vsyncpa [#allocation9], 0
    %15 = vsyncpa [#allocation4], 0
    // Predicated region
    $region2: #{tpu_custom_call.1} parent=1 // pred_check
      _
    $region3: #{tpu_custom_call.1} parent=1 // pred_check_branch
      %17 = sbr.rel (0) target = $region5
    $region4: #{tpu_custom_call.1} parent=1 // pred_region
      %19 = vsyncadd [#allocation3], 0
      %s20 = sshll.u32 %s0, 4
      %s21 = int_to_ptr.hbm [resolvable:$true] %s20
      %s22 = sshll.u32 [#allocation2], 4
      %s23 = int_to_ptr.vmem [resolvable:$true] %s22
      %28 = dma.hbm_to_vmem [thread:$0]  %s21, 512, %s23, [#allocation3], 128, 128, 8
    $region5: #{tpu_custom_call.1} parent=1 // pred_fallthru
      _
    // Predicated region
    $region6: #{tpu_custom_call.1} parent=1 // pred_check
      _
    $region7: #{tpu_custom_call.1} parent=1 // pred_check_branch
      %30 = sbr.rel (0) target = $region9
    $region8: #{tpu_custom_call.1} parent=1 // pred_region
      %32 = vsyncadd [#allocation6], 0
      %s33 = sshll.u32 %s1, 4
      %s34 = int_to_ptr.hbm [resolvable:$true] %s33
      %s35 = sshll.u32 [#allocation5], 4
      %s36 = int_to_ptr.vmem [resolvable:$true] %s35
      %41 = dma.hbm_to_vmem [thread:$0]  %s34, 4096, %s36, [#allocation6], 256, 256, 16
    $region9: #{tpu_custom_call.1} parent=1 // pred_fallthru
      _
    // Predicated region
    $region10: #{tpu_custom_call.1} parent=1 // pred_check
      _
    $region11: #{tpu_custom_call.1} parent=1 // pred_check_branch
      %43 = sbr.rel (0) target = $region13
    $region12: #{tpu_custom_call.1} parent=1 // pred_region
      %45 = vsyncadd [#allocation6], 0
      %s47 = sshll.u32 %s2, 4
      %s48 = int_to_ptr.hbm [resolvable:$true] %s47
      %s49 = sshll.u32 [#allocation7], 4
      %s50 = int_to_ptr.vmem [resolvable:$true] %s49
      %52 = dma.hbm_to_vmem [thread:$0]  %s48, 32, %s50, [#allocation6]
    $region13: #{tpu_custom_call.1} parent=1 // pred_fallthru
      _
    // Predicated region
    $region14: #{tpu_custom_call.1} parent=1 // pred_check
      _
    $region15: #{tpu_custom_call.1} parent=1 // pred_check_branch
      %54 = sbr.rel (0) target = $region17
    $region16: #{tpu_custom_call.1} parent=1 // pred_region
      %56 = vsyncadd [#allocation9], 0
      %s57 = sshll.u32 %s3, 4
      %s58 = int_to_ptr.hbm [resolvable:$true] %s57
      %s59 = sshll.u32 [#allocation8], 4
      %s60 = int_to_ptr.vmem [resolvable:$true] %s59
      %65 = dma.hbm_to_vmem [thread:$0]  %s58, 8192, %s60, [#allocation9], 256, 256, 16
    $region17: #{tpu_custom_call.1} parent=1 // pred_fallthru
      _
    // Predicated region
    $region18: #{tpu_custom_call.1} parent=1 // pred_check
      _
    $region19: #{tpu_custom_call.1} parent=1 // pred_check_branch
      %67 = sbr.rel (0) target = $region21
    $region20: #{tpu_custom_call.1} parent=1 // pred_region
      _
    $region21: #{tpu_custom_call.1} parent=1 // pred_fallthru
      _
    // Predicated region
    $region22: #{tpu_custom_call.1} parent=1 // pred_check
      _
    $region23: #{tpu_custom_call.1} parent=1 // pred_check_branch
      %69 = sbr.rel (0) target = $region25
    $region24: #{tpu_custom_call.1} parent=1 // pred_region
      %71 = vsyncadd [#allocation9], 0
      %s72 = sshll.u32 %s5, 4
      %s73 = int_to_ptr.hbm [resolvable:$true] %s72
      %s74 = sshll.u32 [#allocation10], 4
      %s75 = int_to_ptr.vmem [resolvable:$true] %s74
      %80 = dma.hbm_to_vmem [thread:$0]  %s73, 12288, %s75, [#allocation9], 384, 384, 24
    $region25: #{tpu_custom_call.1} parent=1 // pred_fallthru
      _
    // Predicated region
    $region26: #{tpu_custom_call.1} parent=1 // pred_check
      _
    $region27: #{tpu_custom_call.1} parent=1 // pred_check_branch
      %82 = sbr.rel (0) target = $region29
    $region28: #{tpu_custom_call.1} parent=1 // pred_region
      _
    $region29: #{tpu_custom_call.1} parent=1 // pred_fallthru
      _
    // Predicated region
    $region30: #{tpu_custom_call.1} parent=1 // pred_check
      _
    $region31: #{tpu_custom_call.1} parent=1 // pred_check_branch
      %84 = sbr.rel (0) target = $region33
    $region32: #{tpu_custom_call.1} parent=1 // pred_region
      %86 = dma.done [#allocation3], 512
    $region33: #{tpu_custom_call.1} parent=1 // pred_fallthru
      _
    // Predicated region
    $region34: #{tpu_custom_call.1} parent=1 // pred_check
      _
    $region35: #{tpu_custom_call.1} parent=1 // pred_check_branch
      %88 = sbr.rel (0) target = $region37
    $region36: #{tpu_custom_call.1} parent=1 // pred_region
      %90 = dma.done [#allocation6], 4096
    $region37: #{tpu_custom_call.1} parent=1 // pred_fallthru
      _
    // Predicated region
    $region38: #{tpu_custom_call.1} parent=1 // pred_check
      _
    $region39: #{tpu_custom_call.1} parent=1 // pred_check_branch
      %92 = sbr.rel (0) target = $region41
    $region40: #{tpu_custom_call.1} parent=1 // pred_region
      %94 = dma.done [#allocation6], 32
    $region41: #{tpu_custom_call.1} parent=1 // pred_fallthru
      _
    // Predicated region
    $region42: #{tpu_custom_call.1} parent=1 // pred_check
      _
    $region43: #{tpu_custom_call.1} parent=1 // pred_check_branch
      %96 = sbr.rel (0) target = $region45
    $region44: #{tpu_custom_call.1} parent=1 // pred_region
      %98 = dma.done [#allocation9], 8192
    $region45: #{tpu_custom_call.1} parent=1 // pred_fallthru
      _
    // Predicated region
    $region46: #{tpu_custom_call.1} parent=1 // pred_check
      _
    $region47: #{tpu_custom_call.1} parent=1 // pred_check_branch
      %100 = sbr.rel (0) target = $region49
    $region48: #{tpu_custom_call.1} parent=1 // pred_region
      %102 = dma.done [#allocation9], 12288
    $region49: #{tpu_custom_call.1} parent=1 // pred_fallthru
      _
    %v103 = vld [vmem:[#allocation2] sm:$0xff]
    %v104 = vld [vmem:[#allocation2 + $0x8] sm:$0xff]
    %v105 = vld [vmem:[#allocation2 + $0x10] sm:$0xff]
    %v106 = vld [vmem:[#allocation2 + $0x18] sm:$0xff]
    %v107 = vld [vmem:[#allocation5] sm:$0xff]
    %v108 = vld [vmem:[#allocation5 + $0x8] sm:$0xff]
    %v109 = vld [vmem:[#allocation5 + $0x10] sm:$0xff]
    %v110 = vld [vmem:[#allocation5 + $0x18] sm:$0xff]
    %v111 = vld [vmem:[#allocation5 + $0x20] sm:$0xff]
    %v112 = vld [vmem:[#allocation5 + $0x28] sm:$0xff]
    %v113 = vld [vmem:[#allocation5 + $0x30] sm:$0xff]
    %v114 = vld [vmem:[#allocation5 + $0x38] sm:$0xff]
    %v115 = vld [vmem:[#allocation5 + $0x40] sm:$0xff]
    %v116 = vld [vmem:[#allocation5 + $0x48] sm:$0xff]
    %v117 = vld [vmem:[#allocation5 + $0x50] sm:$0xff]
    %v118 = vld [vmem:[#allocation5 + $0x58] sm:$0xff]
    %v119 = vld [vmem:[#allocation5 + $0x60] sm:$0xff]
    %v120 = vld [vmem:[#allocation5 + $0x68] sm:$0xff]
    %v121 = vld [vmem:[#allocation5 + $0x70] sm:$0xff]
    %v122 = vld [vmem:[#allocation5 + $0x78] sm:$0xff]
    %v123 = vld [vmem:[#allocation5 + $0x80] sm:$0xff]
    %v124 = vld [vmem:[#allocation5 + $0x88] sm:$0xff]
    %v125 = vld [vmem:[#allocation5 + $0x90] sm:$0xff]
    %v126 = vld [vmem:[#allocation5 + $0x98] sm:$0xff]
    %v127 = vld [vmem:[#allocation5 + $0xa0] sm:$0xff]
    %v128 = vld [vmem:[#allocation5 + $0xa8] sm:$0xff]
    %v129 = vld [vmem:[#allocation5 + $0xb0] sm:$0xff]
    %v130 = vld [vmem:[#allocation5 + $0xb8] sm:$0xff]
    %v131 = vld [vmem:[#allocation5 + $0xc0] sm:$0xff]
    %v132 = vld [vmem:[#allocation5 + $0xc8] sm:$0xff]
    %v133 = vld [vmem:[#allocation5 + $0xd0] sm:$0xff]
    %v134 = vld [vmem:[#allocation5 + $0xd8] sm:$0xff]
    %v135 = vld [vmem:[#allocation5 + $0xe0] sm:$0xff]
    %v136 = vld [vmem:[#allocation5 + $0xe8] sm:$0xff]
    %v137 = vld [vmem:[#allocation5 + $0xf0] sm:$0xff]
    %v138 = vld [vmem:[#allocation5 + $0xf8] sm:$0xff]
    %v139 = vld [vmem:[#allocation7] sm:$0x3]
    %v141 = vperm.slane %v139, 0
    %v142 = vperm.slane %v139, 1
    %145 = vmatpush.msra.mxu0 %v137
    %146 = vmatpush.msra.mxu0 %v135
    %147 = vmatpush.msra.mxu0 %v133
    %148 = vmatpush.msra.mxu0 %v131
    %149 = vmatpush.msra.mxu0 %v129
    %150 = vmatpush.msra.mxu0 %v127
    %151 = vmatpush.msra.mxu0 %v125
    %152 = vmatpush.msra.mxu0 %v123
    %153 = vmatpush.msra.mxu0 %v121
    %154 = vmatpush.msra.mxu0 %v119
    %155 = vmatpush.msra.mxu0 %v117
    %156 = vmatpush.msra.mxu0 %v115
    %157 = vmatpush.msra.mxu0 %v113
    %158 = vmatpush.msra.mxu0 %v111
    %159 = vmatpush.msra.mxu0 %v109
    %160 = vmatpush.msra.mxu0 %v107
    %161 = vmatmul.f32.gmra.mxu0 %v103
    %v162 = vpop.f32.mrf.mxu0
    %v163 = vadd.f32 %v141, %v162
    %164 = vmatmul.f32.gmra.mxu0 %v104
    %v165 = vpop.f32.mrf.mxu0
    %v166 = vadd.f32 %v141, %v165
    %167 = vmatmul.f32.gmra.mxu0 %v105
    %v168 = vpop.f32.mrf.mxu0
    %v169 = vadd.f32 %v141, %v168
    %170 = vmatmul.f32.gmra.mxu0 %v106
    %v171 = vpop.f32.mrf.mxu0
    %v172 = vadd.f32 %v141, %v171
    %173 = vdwg.mxu0
    %174 = vmatpush.msra.mxu0 %v138
    %175 = vmatpush.msra.mxu0 %v136
    %176 = vmatpush.msra.mxu0 %v134
    %177 = vmatpush.msra.mxu0 %v132
    %178 = vmatpush.msra.mxu0 %v130
    %179 = vmatpush.msra.mxu0 %v128
    %180 = vmatpush.msra.mxu0 %v126
    %181 = vmatpush.msra.mxu0 %v124
    %182 = vmatpush.msra.mxu0 %v122
    %183 = vmatpush.msra.mxu0 %v120
    %184 = vmatpush.msra.mxu0 %v118
    %185 = vmatpush.msra.mxu0 %v116
    %186 = vmatpush.msra.mxu0 %v114
    %187 = vmatpush.msra.mxu0 %v112
    %188 = vmatpush.msra.mxu0 %v110
    %189 = vmatpush.msra.mxu0 %v108
    %190 = vmatmul.f32.gmra.mxu0 %v103
    %v191 = vpop.f32.mrf.mxu0
    %v192 = vadd.f32 %v142, %v191
    %193 = vmatmul.f32.gmra.mxu0 %v104
    %v194 = vpop.f32.mrf.mxu0
    %v195 = vadd.f32 %v142, %v194
    %196 = vmatmul.f32.gmra.mxu0 %v105
    %v197 = vpop.f32.mrf.mxu0
    %v198 = vadd.f32 %v142, %v197
    %199 = vmatmul.f32.gmra.mxu0 %v106
    %v200 = vpop.f32.mrf.mxu0
    %v201 = vadd.f32 %v142, %v200
    %202 = vdwg.mxu0
    %v203 = vmax.f32 %v163, 0.0
    %v204 = vmax.f32 %v192, 0.0
    %v205 = vmax.f32 %v166, 0.0
    %v206 = vmax.f32 %v195, 0.0
    %v207 = vmax.f32 %v169, 0.0
    %v208 = vmax.f32 %v198, 0.0
    %v209 = vmax.f32 %v172, 0.0
    %v210 = vmax.f32 %v201, 0.0
    %v211 = vld [vmem:[#allocation8] sm:$0xff]
    %v212 = vld [vmem:[#allocation8 + $0x8] sm:$0xff]
    %v213 = vld [vmem:[#allocation8 + $0x10] sm:$0xff]
    %v214 = vld [vmem:[#allocation8 + $0x18] sm:$0xff]
    %v215 = vld [vmem:[#allocation8 + $0x20] sm:$0xff]
    %v216 = vld [vmem:[#allocation8 + $0x28] sm:$0xff]
    %v217 = vld [vmem:[#allocation8 + $0x30] sm:$0xff]
    %v218 = vld [vmem:[#allocation8 + $0x38] sm:$0xff]
    %v219 = vld [vmem:[#allocation8 + $0x40] sm:$0xff]
    %v220 = vld [vmem:[#allocation8 + $0x48] sm:$0xff]
    %v221 = vld [vmem:[#allocation8 + $0x50] sm:$0xff]
    %v222 = vld [vmem:[#allocation8 + $0x58] sm:$0xff]
    %v223 = vld [vmem:[#allocation8 + $0x60] sm:$0xff]
    %v224 = vld [vmem:[#allocation8 + $0x68] sm:$0xff]
    %v225 = vld [vmem:[#allocation8 + $0x70] sm:$0xff]
    %v226 = vld [vmem:[#allocation8 + $0x78] sm:$0xff]
    %v227 = vld [vmem:[#allocation8 + $0x80] sm:$0xff]
    %v228 = vld [vmem:[#allocation8 + $0x88] sm:$0xff]
    %v229 = vld [vmem:[#allocation8 + $0x90] sm:$0xff]
    %v230 = vld [vmem:[#allocation8 + $0x98] sm:$0xff]
    %v231 = vld [vmem:[#allocation8 + $0xa0] sm:$0xff]
    %v232 = vld [vmem:[#allocation8 + $0xa8] sm:$0xff]
    %v233 = vld [vmem:[#allocation8 + $0xb0] sm:$0xff]
    %v234 = vld [vmem:[#allocation8 + $0xb8] sm:$0xff]
    %v235 = vld [vmem:[#allocation8 + $0xc0] sm:$0xff]
    %v236 = vld [vmem:[#allocation8 + $0xc8] sm:$0xff]
    %v237 = vld [vmem:[#allocation8 + $0xd0] sm:$0xff]
    %v238 = vld [vmem:[#allocation8 + $0xd8] sm:$0xff]
    %v239 = vld [vmem:[#allocation8 + $0xe0] sm:$0xff]
    %v240 = vld [vmem:[#allocation8 + $0xe8] sm:$0xff]
    %v241 = vld [vmem:[#allocation8 + $0xf0] sm:$0xff]
    %v242 = vld [vmem:[#allocation8 + $0xf8] sm:$0xff]
    %v243 = vld [vmem:[#allocation8 + $0x100] sm:$0xff]
    %v244 = vld [vmem:[#allocation8 + $0x108] sm:$0xff]
    %v245 = vld [vmem:[#allocation8 + $0x110] sm:$0xff]
    %v246 = vld [vmem:[#allocation8 + $0x118] sm:$0xff]
    %v247 = vld [vmem:[#allocation8 + $0x120] sm:$0xff]
    %v248 = vld [vmem:[#allocation8 + $0x128] sm:$0xff]
    %v249 = vld [vmem:[#allocation8 + $0x130] sm:$0xff]
    %v250 = vld [vmem:[#allocation8 + $0x138] sm:$0xff]
    %v251 = vld [vmem:[#allocation8 + $0x140] sm:$0xff]
    %v252 = vld [vmem:[#allocation8 + $0x148] sm:$0xff]
    %v253 = vld [vmem:[#allocation8 + $0x150] sm:$0xff]
    %v254 = vld [vmem:[#allocation8 + $0x158] sm:$0xff]
    %v255 = vld [vmem:[#allocation8 + $0x160] sm:$0xff]
    %v256 = vld [vmem:[#allocation8 + $0x168] sm:$0xff]
    %v257 = vld [vmem:[#allocation8 + $0x170] sm:$0xff]
    %v258 = vld [vmem:[#allocation8 + $0x178] sm:$0xff]
    %v259 = vld [vmem:[#allocation8 + $0x180] sm:$0xff]
    %v260 = vld [vmem:[#allocation8 + $0x188] sm:$0xff]
    %v261 = vld [vmem:[#allocation8 + $0x190] sm:$0xff]
    %v262 = vld [vmem:[#allocation8 + $0x198] sm:$0xff]
    %v263 = vld [vmem:[#allocation8 + $0x1a0] sm:$0xff]
    %v264 = vld [vmem:[#allocation8 + $0x1a8] sm:$0xff]
    %v265 = vld [vmem:[#allocation8 + $0x1b0] sm:$0xff]
    %v266 = vld [vmem:[#allocation8 + $0x1b8] sm:$0xff]
    %v267 = vld [vmem:[#allocation8 + $0x1c0] sm:$0xff]
    %v268 = vld [vmem:[#allocation8 + $0x1c8] sm:$0xff]
    %v269 = vld [vmem:[#allocation8 + $0x1d0] sm:$0xff]
    %v270 = vld [vmem:[#allocation8 + $0x1d8] sm:$0xff]
    %v271 = vld [vmem:[#allocation8 + $0x1e0] sm:$0xff]
    %v272 = vld [vmem:[#allocation8 + $0x1e8] sm:$0xff]
    %v273 = vld [vmem:[#allocation8 + $0x1f0] sm:$0xff]
    %v274 = vld [vmem:[#allocation8 + $0x1f8] sm:$0xff]
    %v275 = vld [vmem:[%s4] sm:$0x3]
    %v277 = vperm.slane %v275, 0
    %v278 = vperm.slane %v275, 1
    %281 = vmatpush.msra.mxu0 %v241
    %282 = vmatpush.msra.mxu0 %v239
    %283 = vmatpush.msra.mxu0 %v237
    %284 = vmatpush.msra.mxu0 %v235
    %285 = vmatpush.msra.mxu0 %v233
    %286 = vmatpush.msra.mxu0 %v231
    %287 = vmatpush.msra.mxu0 %v229
    %288 = vmatpush.msra.mxu0 %v227
    %289 = vmatpush.msra.mxu0 %v225
    %290 = vmatpush.msra.mxu0 %v223
    %291 = vmatpush.msra.mxu0 %v221
    %292 = vmatpush.msra.mxu0 %v219
    %293 = vmatpush.msra.mxu0 %v217
    %294 = vmatpush.msra.mxu0 %v215
    %295 = vmatpush.msra.mxu0 %v213
    %296 = vmatpush.msra.mxu0 %v211
    %297 = vmatmul.f32.gmra.mxu0 %v203
    %v298 = vpop.f32.mrf.mxu0
    %v299 = vadd.f32 %v277, %v298
    %300 = vmatmul.f32.gmra.mxu0 %v205
    %v301 = vpop.f32.mrf.mxu0
    %v302 = vadd.f32 %v277, %v301
    %303 = vmatmul.f32.gmra.mxu0 %v207
    %v304 = vpop.f32.mrf.mxu0
    %v305 = vadd.f32 %v277, %v304
    %306 = vmatmul.f32.gmra.mxu0 %v209
    %v307 = vpop.f32.mrf.mxu0
    %v308 = vadd.f32 %v277, %v307
    %309 = vdwg.mxu0
    %310 = vmatpush.msra.mxu0 %v273
    %311 = vmatpush.msra.mxu0 %v271
    %312 = vmatpush.msra.mxu0 %v269
    %313 = vmatpush.msra.mxu0 %v267
    %314 = vmatpush.msra.mxu0 %v265
    %315 = vmatpush.msra.mxu0 %v263
    %316 = vmatpush.msra.mxu0 %v261
    %317 = vmatpush.msra.mxu0 %v259
    %318 = vmatpush.msra.mxu0 %v257
    %319 = vmatpush.msra.mxu0 %v255
    %320 = vmatpush.msra.mxu0 %v253
    %321 = vmatpush.msra.mxu0 %v251
    %322 = vmatpush.msra.mxu0 %v249
    %323 = vmatpush.msra.mxu0 %v247
    %324 = vmatpush.msra.mxu0 %v245
    %325 = vmatpush.msra.mxu0 %v243
    %326 = vmatmul.f32.gmra.mxu0 %v204
    %v327 = vpop.f32.mrf.mxu0
    %v328 = vadd.f32 %v299, %v327
    %329 = vmatmul.f32.gmra.mxu0 %v206
    %v330 = vpop.f32.mrf.mxu0
    %v331 = vadd.f32 %v302, %v330
    %332 = vmatmul.f32.gmra.mxu0 %v208
    %v333 = vpop.f32.mrf.mxu0
    %v334 = vadd.f32 %v305, %v333
    %335 = vmatmul.f32.gmra.mxu0 %v210
    %v336 = vpop.f32.mrf.mxu0
    %v337 = vadd.f32 %v308, %v336
    %338 = vdwg.mxu0
    %339 = vmatpush.msra.mxu0 %v242
    %340 = vmatpush.msra.mxu0 %v240
    %341 = vmatpush.msra.mxu0 %v238
    %342 = vmatpush.msra.mxu0 %v236
    %343 = vmatpush.msra.mxu0 %v234
    %344 = vmatpush.msra.mxu0 %v232
    %345 = vmatpush.msra.mxu0 %v230
    %346 = vmatpush.msra.mxu0 %v228
    %347 = vmatpush.msra.mxu0 %v226
    %348 = vmatpush.msra.mxu0 %v224
    %349 = vmatpush.msra.mxu0 %v222
    %350 = vmatpush.msra.mxu0 %v220
    %351 = vmatpush.msra.mxu0 %v218
    %352 = vmatpush.msra.mxu0 %v216
    %353 = vmatpush.msra.mxu0 %v214
    %354 = vmatpush.msra.mxu0 %v212
    %355 = vmatmul.f32.gmra.mxu0 %v203
    %v356 = vpop.f32.mrf.mxu0
    %v357 = vadd.f32 %v278, %v356
    %358 = vmatmul.f32.gmra.mxu0 %v205
    %v359 = vpop.f32.mrf.mxu0
    %v360 = vadd.f32 %v278, %v359
    %361 = vmatmul.f32.gmra.mxu0 %v207
    %v362 = vpop.f32.mrf.mxu0
    %v363 = vadd.f32 %v278, %v362
    %364 = vmatmul.f32.gmra.mxu0 %v209
    %v365 = vpop.f32.mrf.mxu0
    %v366 = vadd.f32 %v278, %v365
    %367 = vdwg.mxu0
    %368 = vmatpush.msra.mxu0 %v274
    %369 = vmatpush.msra.mxu0 %v272
    %370 = vmatpush.msra.mxu0 %v270
    %371 = vmatpush.msra.mxu0 %v268
    %372 = vmatpush.msra.mxu0 %v266
    %373 = vmatpush.msra.mxu0 %v264
    %374 = vmatpush.msra.mxu0 %v262
    %375 = vmatpush.msra.mxu0 %v260
    %376 = vmatpush.msra.mxu0 %v258
    %377 = vmatpush.msra.mxu0 %v256
    %378 = vmatpush.msra.mxu0 %v254
    %379 = vmatpush.msra.mxu0 %v252
    %380 = vmatpush.msra.mxu0 %v250
    %381 = vmatpush.msra.mxu0 %v248
    %382 = vmatpush.msra.mxu0 %v246
    %383 = vmatpush.msra.mxu0 %v244
    %384 = vmatmul.f32.gmra.mxu0 %v204
    %v385 = vpop.f32.mrf.mxu0
    %v386 = vadd.f32 %v357, %v385
    %387 = vmatmul.f32.gmra.mxu0 %v206
    %v388 = vpop.f32.mrf.mxu0
    %v389 = vadd.f32 %v360, %v388
    %390 = vmatmul.f32.gmra.mxu0 %v208
    %v391 = vpop.f32.mrf.mxu0
    %v392 = vadd.f32 %v363, %v391
    %393 = vmatmul.f32.gmra.mxu0 %v210
    %v394 = vpop.f32.mrf.mxu0
    %v395 = vadd.f32 %v366, %v394
    %396 = vdwg.mxu0
    %v397 = vmax.f32 %v328, 0.0
    %v398 = vmax.f32 %v386, 0.0
    %v399 = vmax.f32 %v331, 0.0
    %v400 = vmax.f32 %v389, 0.0
    %v401 = vmax.f32 %v334, 0.0
    %v402 = vmax.f32 %v392, 0.0
    %v403 = vmax.f32 %v337, 0.0
    %v404 = vmax.f32 %v395, 0.0
    %v405 = vld [vmem:[#allocation10] sm:$0xff]
    %v406 = vld [vmem:[#allocation10 + $0x8] sm:$0xff]
    %v407 = vld [vmem:[#allocation10 + $0x10] sm:$0xff]
    %v408 = vld [vmem:[#allocation10 + $0x18] sm:$0xff]
    %v409 = vld [vmem:[#allocation10 + $0x20] sm:$0xff]
    %v410 = vld [vmem:[#allocation10 + $0x28] sm:$0xff]
    %v411 = vld [vmem:[#allocation10 + $0x30] sm:$0xff]
    %v412 = vld [vmem:[#allocation10 + $0x38] sm:$0xff]
    %v413 = vld [vmem:[#allocation10 + $0x40] sm:$0xff]
    %v414 = vld [vmem:[#allocation10 + $0x48] sm:$0xff]
    %v415 = vld [vmem:[#allocation10 + $0x50] sm:$0xff]
    %v416 = vld [vmem:[#allocation10 + $0x58] sm:$0xff]
    %v417 = vld [vmem:[#allocation10 + $0x60] sm:$0xff]
    %v418 = vld [vmem:[#allocation10 + $0x68] sm:$0xff]
    %v419 = vld [vmem:[#allocation10 + $0x70] sm:$0xff]
    %v420 = vld [vmem:[#allocation10 + $0x78] sm:$0xff]
    %v421 = vld [vmem:[#allocation10 + $0x80] sm:$0xff]
    %v422 = vld [vmem:[#allocation10 + $0x88] sm:$0xff]
    %v423 = vld [vmem:[#allocation10 + $0x90] sm:$0xff]
    %v424 = vld [vmem:[#allocation10 + $0x98] sm:$0xff]
    %v425 = vld [vmem:[#allocation10 + $0xa0] sm:$0xff]
    %v426 = vld [vmem:[#allocation10 + $0xa8] sm:$0xff]
    %v427 = vld [vmem:[#allocation10 + $0xb0] sm:$0xff]
    %v428 = vld [vmem:[#allocation10 + $0xb8] sm:$0xff]
    %v429 = vld [vmem:[#allocation10 + $0xc0] sm:$0xff]
    %v430 = vld [vmem:[#allocation10 + $0xc8] sm:$0xff]
    %v431 = vld [vmem:[#allocation10 + $0xd0] sm:$0xff]
    %v432 = vld [vmem:[#allocation10 + $0xd8] sm:$0xff]
    %v433 = vld [vmem:[#allocation10 + $0xe0] sm:$0xff]
    %v434 = vld [vmem:[#allocation10 + $0xe8] sm:$0xff]
    %v435 = vld [vmem:[#allocation10 + $0xf0] sm:$0xff]
    %v436 = vld [vmem:[#allocation10 + $0xf8] sm:$0xff]
    %v437 = vld [vmem:[#allocation10 + $0x100] sm:$0xff]
    %v438 = vld [vmem:[#allocation10 + $0x108] sm:$0xff]
    %v439 = vld [vmem:[#allocation10 + $0x110] sm:$0xff]
    %v440 = vld [vmem:[#allocation10 + $0x118] sm:$0xff]
    %v441 = vld [vmem:[#allocation10 + $0x120] sm:$0xff]
    %v442 = vld [vmem:[#allocation10 + $0x128] sm:$0xff]
    %v443 = vld [vmem:[#allocation10 + $0x130] sm:$0xff]
    %v444 = vld [vmem:[#allocation10 + $0x138] sm:$0xff]
    %v445 = vld [vmem:[#allocation10 + $0x140] sm:$0xff]
    %v446 = vld [vmem:[#allocation10 + $0x148] sm:$0xff]
    %v447 = vld [vmem:[#allocation10 + $0x150] sm:$0xff]
    %v448 = vld [vmem:[#allocation10 + $0x158] sm:$0xff]
    %v449 = vld [vmem:[#allocation10 + $0x160] sm:$0xff]
    %v450 = vld [vmem:[#allocation10 + $0x168] sm:$0xff]
    %v451 = vld [vmem:[#allocation10 + $0x170] sm:$0xff]
    %v452 = vld [vmem:[#allocation10 + $0x178] sm:$0xff]
    %v453 = vld [vmem:[#allocation10 + $0x180] sm:$0xff]
    %v454 = vld [vmem:[#allocation10 + $0x188] sm:$0xff]
    %v455 = vld [vmem:[#allocation10 + $0x190] sm:$0xff]
    %v456 = vld [vmem:[#allocation10 + $0x198] sm:$0xff]
    %v457 = vld [vmem:[#allocation10 + $0x1a0] sm:$0xff]
    %v458 = vld [vmem:[#allocation10 + $0x1a8] sm:$0xff]
    %v459 = vld [vmem:[#allocation10 + $0x1b0] sm:$0xff]
    %v460 = vld [vmem:[#allocation10 + $0x1b8] sm:$0xff]
    %v461 = vld [vmem:[#allocation10 + $0x1c0] sm:$0xff]
    %v462 = vld [vmem:[#allocation10 + $0x1c8] sm:$0xff]
    %v463 = vld [vmem:[#allocation10 + $0x1d0] sm:$0xff]
    %v464 = vld [vmem:[#allocation10 + $0x1d8] sm:$0xff]
    %v465 = vld [vmem:[#allocation10 + $0x1e0] sm:$0xff]
    %v466 = vld [vmem:[#allocation10 + $0x1e8] sm:$0xff]
    %v467 = vld [vmem:[#allocation10 + $0x1f0] sm:$0xff]
    %v468 = vld [vmem:[#allocation10 + $0x1f8] sm:$0xff]
    %v469 = vld [vmem:[#allocation10 + $0x200] sm:$0xff]
    %v470 = vld [vmem:[#allocation10 + $0x208] sm:$0xff]
    %v471 = vld [vmem:[#allocation10 + $0x210] sm:$0xff]
    %v472 = vld [vmem:[#allocation10 + $0x218] sm:$0xff]
    %v473 = vld [vmem:[#allocation10 + $0x220] sm:$0xff]
    %v474 = vld [vmem:[#allocation10 + $0x228] sm:$0xff]
    %v475 = vld [vmem:[#allocation10 + $0x230] sm:$0xff]
    %v476 = vld [vmem:[#allocation10 + $0x238] sm:$0xff]
    %v477 = vld [vmem:[#allocation10 + $0x240] sm:$0xff]
    %v478 = vld [vmem:[#allocation10 + $0x248] sm:$0xff]
    %v479 = vld [vmem:[#allocation10 + $0x250] sm:$0xff]
    %v480 = vld [vmem:[#allocation10 + $0x258] sm:$0xff]
    %v481 = vld [vmem:[#allocation10 + $0x260] sm:$0xff]
    %v482 = vld [vmem:[#allocation10 + $0x268] sm:$0xff]
    %v483 = vld [vmem:[#allocation10 + $0x270] sm:$0xff]
    %v484 = vld [vmem:[#allocation10 + $0x278] sm:$0xff]
    %v485 = vld [vmem:[#allocation10 + $0x280] sm:$0xff]
    %v486 = vld [vmem:[#allocation10 + $0x288] sm:$0xff]
    %v487 = vld [vmem:[#allocation10 + $0x290] sm:$0xff]
    %v488 = vld [vmem:[#allocation10 + $0x298] sm:$0xff]
    %v489 = vld [vmem:[#allocation10 + $0x2a0] sm:$0xff]
    %v490 = vld [vmem:[#allocation10 + $0x2a8] sm:$0xff]
    %v491 = vld [vmem:[#allocation10 + $0x2b0] sm:$0xff]
    %v492 = vld [vmem:[#allocation10 + $0x2b8] sm:$0xff]
    %v493 = vld [vmem:[#allocation10 + $0x2c0] sm:$0xff]
    %v494 = vld [vmem:[#allocation10 + $0x2c8] sm:$0xff]
    %v495 = vld [vmem:[#allocation10 + $0x2d0] sm:$0xff]
    %v496 = vld [vmem:[#allocation10 + $0x2d8] sm:$0xff]
    %v497 = vld [vmem:[#allocation10 + $0x2e0] sm:$0xff]
    %v498 = vld [vmem:[#allocation10 + $0x2e8] sm:$0xff]
    %v499 = vld [vmem:[#allocation10 + $0x2f0] sm:$0xff]
    %v500 = vld [vmem:[#allocation10 + $0x2f8] sm:$0xff]
    %v501 = vld [vmem:[%s6] sm:$0x7]
    %v503 = vperm.slane %v501, 0
    %v504 = vperm.slane %v501, 1
    %v505 = vperm.slane %v501, 2
    %509 = vmatpush.msra.mxu0 %v450
    %510 = vmatpush.msra.mxu0 %v447
    %511 = vmatpush.msra.mxu0 %v444
    %512 = vmatpush.msra.mxu0 %v441
    %513 = vmatpush.msra.mxu0 %v438
    %514 = vmatpush.msra.mxu0 %v435
    %515 = vmatpush.msra.mxu0 %v432
    %516 = vmatpush.msra.mxu0 %v429
    %517 = vmatpush.msra.mxu0 %v426
    %518 = vmatpush.msra.mxu0 %v423
    %519 = vmatpush.msra.mxu0 %v420
    %520 = vmatpush.msra.mxu0 %v417
    %521 = vmatpush.msra.mxu0 %v414
    %522 = vmatpush.msra.mxu0 %v411
    %523 = vmatpush.msra.mxu0 %v408
    %524 = vmatpush.msra.mxu0 %v405
    %525 = vmatmul.f32.gmra.mxu0 %v397
    %v526 = vpop.f32.mrf.mxu0
    %v527 = vadd.f32 %v503, %v526
    %528 = vmatmul.f32.gmra.mxu0 %v399
    %v529 = vpop.f32.mrf.mxu0
    %v530 = vadd.f32 %v503, %v529
    %531 = vmatmul.f32.gmra.mxu0 %v401
    %v532 = vpop.f32.mrf.mxu0
    %v533 = vadd.f32 %v503, %v532
    %534 = vmatmul.f32.gmra.mxu0 %v403
    %v535 = vpop.f32.mrf.mxu0
    %v536 = vadd.f32 %v503, %v535
    %537 = vdwg.mxu0
    %538 = vmatpush.msra.mxu0 %v498
    %539 = vmatpush.msra.mxu0 %v495
    %540 = vmatpush.msra.mxu0 %v492
    %541 = vmatpush.msra.mxu0 %v489
    %542 = vmatpush.msra.mxu0 %v486
    %543 = vmatpush.msra.mxu0 %v483
    %544 = vmatpush.msra.mxu0 %v480
    %545 = vmatpush.msra.mxu0 %v477
    %546 = vmatpush.msra.mxu0 %v474
    %547 = vmatpush.msra.mxu0 %v471
    %548 = vmatpush.msra.mxu0 %v468
    %549 = vmatpush.msra.mxu0 %v465
    %550 = vmatpush.msra.mxu0 %v462
    %551 = vmatpush.msra.mxu0 %v459
    %552 = vmatpush.msra.mxu0 %v456
    %553 = vmatpush.msra.mxu0 %v453
    %554 = vmatmul.f32.gmra.mxu0 %v398
    %v555 = vpop.f32.mrf.mxu0
    %v556 = vadd.f32 %v527, %v555
    %557 = vmatmul.f32.gmra.mxu0 %v400
    %v558 = vpop.f32.mrf.mxu0
    %v559 = vadd.f32 %v530, %v558
    %560 = vmatmul.f32.gmra.mxu0 %v402
    %v561 = vpop.f32.mrf.mxu0
    %v562 = vadd.f32 %v533, %v561
    %563 = vmatmul.f32.gmra.mxu0 %v404
    %v564 = vpop.f32.mrf.mxu0
    %v565 = vadd.f32 %v536, %v564
    %566 = vdwg.mxu0
    %567 = vmatpush.msra.mxu0 %v451
    %568 = vmatpush.msra.mxu0 %v448
    %569 = vmatpush.msra.mxu0 %v445
    %570 = vmatpush.msra.mxu0 %v442
    %571 = vmatpush.msra.mxu0 %v439
    %572 = vmatpush.msra.mxu0 %v436
    %573 = vmatpush.msra.mxu0 %v433
    %574 = vmatpush.msra.mxu0 %v430
    %575 = vmatpush.msra.mxu0 %v427
    %576 = vmatpush.msra.mxu0 %v424
    %577 = vmatpush.msra.mxu0 %v421
    %578 = vmatpush.msra.mxu0 %v418
    %579 = vmatpush.msra.mxu0 %v415
    %580 = vmatpush.msra.mxu0 %v412
    %581 = vmatpush.msra.mxu0 %v409
    %582 = vmatpush.msra.mxu0 %v406
    %583 = vmatmul.f32.gmra.mxu0 %v397
    %v584 = vpop.f32.mrf.mxu0
    %v585 = vadd.f32 %v504, %v584
    %586 = vmatmul.f32.gmra.mxu0 %v399
    %v587 = vpop.f32.mrf.mxu0
    %v588 = vadd.f32 %v504, %v587
    %589 = vmatmul.f32.gmra.mxu0 %v401
    %v590 = vpop.f32.mrf.mxu0
    %v591 = vadd.f32 %v504, %v590
    %592 = vmatmul.f32.gmra.mxu0 %v403
    %v593 = vpop.f32.mrf.mxu0
    %v594 = vadd.f32 %v504, %v593
    %595 = vdwg.mxu0
    %596 = vmatpush.msra.mxu0 %v499
    %597 = vmatpush.msra.mxu0 %v496
    %598 = vmatpush.msra.mxu0 %v493
    %599 = vmatpush.msra.mxu0 %v490
    %600 = vmatpush.msra.mxu0 %v487
    %601 = vmatpush.msra.mxu0 %v484
    %602 = vmatpush.msra.mxu0 %v481
    %603 = vmatpush.msra.mxu0 %v478
    %604 = vmatpush.msra.mxu0 %v475
    %605 = vmatpush.msra.mxu0 %v472
    %606 = vmatpush.msra.mxu0 %v469
    %607 = vmatpush.msra.mxu0 %v466
    %608 = vmatpush.msra.mxu0 %v463
    %609 = vmatpush.msra.mxu0 %v460
    %610 = vmatpush.msra.mxu0 %v457
    %611 = vmatpush.msra.mxu0 %v454
    %612 = vmatmul.f32.gmra.mxu0 %v398
    %v613 = vpop.f32.mrf.mxu0
    %v614 = vadd.f32 %v585, %v613
    %615 = vmatmul.f32.gmra.mxu0 %v400
    %v616 = vpop.f32.mrf.mxu0
    %v617 = vadd.f32 %v588, %v616
    %618 = vmatmul.f32.gmra.mxu0 %v402
    %v619 = vpop.f32.mrf.mxu0
    %v620 = vadd.f32 %v591, %v619
    %621 = vmatmul.f32.gmra.mxu0 %v404
    %v622 = vpop.f32.mrf.mxu0
    %v623 = vadd.f32 %v594, %v622
    %624 = vdwg.mxu0
    %625 = vmatpush.msra.mxu0 %v452
    %626 = vmatpush.msra.mxu0 %v449
    %627 = vmatpush.msra.mxu0 %v446
    %628 = vmatpush.msra.mxu0 %v443
    %629 = vmatpush.msra.mxu0 %v440
    %630 = vmatpush.msra.mxu0 %v437
    %631 = vmatpush.msra.mxu0 %v434
    %632 = vmatpush.msra.mxu0 %v431
    %633 = vmatpush.msra.mxu0 %v428
    %634 = vmatpush.msra.mxu0 %v425
    %635 = vmatpush.msra.mxu0 %v422
    %636 = vmatpush.msra.mxu0 %v419
    %637 = vmatpush.msra.mxu0 %v416
    %638 = vmatpush.msra.mxu0 %v413
    %639 = vmatpush.msra.mxu0 %v410
    %640 = vmatpush.msra.mxu0 %v407
    %641 = vmatmul.f32.gmra.mxu0 %v397
    %v642 = vpop.f32.mrf.mxu0
    %v643 = vadd.f32 %v505, %v642
    %644 = vmatmul.f32.gmra.mxu0 %v399
    %v645 = vpop.f32.mrf.mxu0
    %v646 = vadd.f32 %v505, %v645
    %647 = vmatmul.f32.gmra.mxu0 %v401
    %v648 = vpop.f32.mrf.mxu0
    %v649 = vadd.f32 %v505, %v648
    %650 = vmatmul.f32.gmra.mxu0 %v403
    %v651 = vpop.f32.mrf.mxu0
    %v652 = vadd.f32 %v505, %v651
    %653 = vdwg.mxu0
    %654 = vmatpush.msra.mxu0 %v500
    %655 = vmatpush.msra.mxu0 %v497
    %656 = vmatpush.msra.mxu0 %v494
    %657 = vmatpush.msra.mxu0 %v491
    %658 = vmatpush.msra.mxu0 %v488
    %659 = vmatpush.msra.mxu0 %v485
    %660 = vmatpush.msra.mxu0 %v482
    %661 = vmatpush.msra.mxu0 %v479
    %662 = vmatpush.msra.mxu0 %v476
    %663 = vmatpush.msra.mxu0 %v473
    %664 = vmatpush.msra.mxu0 %v470
    %665 = vmatpush.msra.mxu0 %v467
    %666 = vmatpush.msra.mxu0 %v464
    %667 = vmatpush.msra.mxu0 %v461
    %668 = vmatpush.msra.mxu0 %v458
    %669 = vmatpush.msra.mxu0 %v455
    %670 = vmatmul.f32.gmra.mxu0 %v398
    %v671 = vpop.f32.mrf.mxu0
    %v672 = vadd.f32 %v643, %v671
    %673 = vmatmul.f32.gmra.mxu0 %v400
    %v674 = vpop.f32.mrf.mxu0
    %v675 = vadd.f32 %v646, %v674
    %676 = vmatmul.f32.gmra.mxu0 %v402
    %v677 = vpop.f32.mrf.mxu0
    %v678 = vadd.f32 %v649, %v677
    %679 = vmatmul.f32.gmra.mxu0 %v404
    %v680 = vpop.f32.mrf.mxu0
    %v681 = vadd.f32 %v652, %v680
    %682 = vdwg.mxu0
    %v683 = vmax.f32 %v556, %v614
    %v684 = vmax.f32 %v559, %v617
    %v685 = vmax.f32 %v562, %v620
    %v686 = vmax.f32 %v565, %v623
    %v687 = vmax.f32 %v683, %v672
    %v688 = vmax.f32 %v684, %v675
    %v689 = vmax.f32 %v685, %v678
    %v690 = vmax.f32 %v686, %v681
    %v691 = vsub.f32 %v556, %v687
    %v692 = vsub.f32 %v559, %v688
    %v693 = vsub.f32 %v562, %v689
    %v694 = vsub.f32 %v565, %v690
    %v695 = vmul.f32 %v691, 1.442695
    %v696 = vpow.pop %v695
    %v697 = vmul.f32 %v692, 1.442695
    %v698 = vpow.pop %v697
    %v699 = vmul.f32 %v693, 1.442695
    %v700 = vpow.pop %v699
    %v701 = vmul.f32 %v694, 1.442695
    %v702 = vpow.pop %v701
    %v703 = vsub.f32 %v614, %v687
    %v704 = vsub.f32 %v617, %v688
    %v705 = vsub.f32 %v620, %v689
    %v706 = vsub.f32 %v623, %v690
    %v707 = vmul.f32 %v703, 1.442695
    %v708 = vpow.pop %v707
    %v709 = vmul.f32 %v704, 1.442695
    %v710 = vpow.pop %v709
    %v711 = vmul.f32 %v705, 1.442695
    %v712 = vpow.pop %v711
    %v713 = vmul.f32 %v706, 1.442695
    %v714 = vpow.pop %v713
    %v715 = vsub.f32 %v672, %v687
    %v716 = vsub.f32 %v675, %v688
    %v717 = vsub.f32 %v678, %v689
    %v718 = vsub.f32 %v681, %v690
    %v719 = vmul.f32 %v715, 1.442695
    %v720 = vpow.pop %v719
    %v721 = vmul.f32 %v716, 1.442695
    %v722 = vpow.pop %v721
    %v723 = vmul.f32 %v717, 1.442695
    %v724 = vpow.pop %v723
    %v725 = vmul.f32 %v718, 1.442695
    %v726 = vpow.pop %v725
    %v727 = vadd.f32 %v696, %v708
    %v728 = vadd.f32 %v698, %v710
    %v729 = vadd.f32 %v700, %v712
    %v730 = vadd.f32 %v702, %v714
    %v731 = vadd.f32 %v727, %v720
    %v732 = vadd.f32 %v728, %v722
    %v733 = vadd.f32 %v729, %v724
    %v734 = vadd.f32 %v730, %v726
    %v735 = vrcp.pop %v731
    %v736 = vmul.f32 %v731, %v735
    %v737 = vsub.f32 1.0, %v736
    %v738 = vmul.f32 %v735, %v737
    %v739 = vadd.f32 %v735, %v738
    %vm740 = vweird.f32 %v731
    %vm741 = vweird.f32 %v735
    %vm742 = vmor %vm740, %vm741
    %v743 = vsel %vm742, %v735, %v739
    %v744 = vand.u32 2147483647, %v731
    %vm745 = vcmp.eq.f32.partialorder %v744, 8.507059e+37
    %v746 = vand.u32 %v731, 2147483648
    %v747 = vor.u32 1.1754944e-38, %v746
    %v748 = vsel %vm745, %v747, %v743
    %v749 = vmul.f32 1.0, %v748
    %v750 = vrcp.pop %v732
    %v751 = vmul.f32 %v732, %v750
    %v752 = vsub.f32 1.0, %v751
    %v753 = vmul.f32 %v750, %v752
    %v754 = vadd.f32 %v750, %v753
    %vm755 = vweird.f32 %v732
    %vm756 = vweird.f32 %v750
    %vm757 = vmor %vm755, %vm756
    %v758 = vsel %vm757, %v750, %v754
    %v759 = vand.u32 2147483647, %v732
    %vm760 = vcmp.eq.f32.partialorder %v759, 8.507059e+37
    %v761 = vand.u32 %v732, 2147483648
    %v762 = vor.u32 1.1754944e-38, %v761
    %v763 = vsel %vm760, %v762, %v758
    %v764 = vmul.f32 1.0, %v763
    %v765 = vrcp.pop %v733
    %v766 = vmul.f32 %v733, %v765
    %v767 = vsub.f32 1.0, %v766
    %v768 = vmul.f32 %v765, %v767
    %v769 = vadd.f32 %v765, %v768
    %vm770 = vweird.f32 %v733
    %vm771 = vweird.f32 %v765
    %vm772 = vmor %vm770, %vm771
    %v773 = vsel %vm772, %v765, %v769
    %v774 = vand.u32 2147483647, %v733
    %vm775 = vcmp.eq.f32.partialorder %v774, 8.507059e+37
    %v776 = vand.u32 %v733, 2147483648
    %v777 = vor.u32 1.1754944e-38, %v776
    %v778 = vsel %vm775, %v777, %v773
    %v779 = vmul.f32 1.0, %v778
    %v780 = vrcp.pop %v734
    %v781 = vmul.f32 %v734, %v780
    %v782 = vsub.f32 1.0, %v781
    %v783 = vmul.f32 %v780, %v782
    %v784 = vadd.f32 %v780, %v783
    %vm785 = vweird.f32 %v734
    %vm786 = vweird.f32 %v780
    %vm787 = vmor %vm785, %vm786
    %v788 = vsel %vm787, %v780, %v784
    %v789 = vand.u32 2147483647, %v734
    %vm790 = vcmp.eq.f32.partialorder %v789, 8.507059e+37
    %v791 = vand.u32 %v734, 2147483648
    %v792 = vor.u32 1.1754944e-38, %v791
    %v793 = vsel %vm790, %v792, %v788
    %v794 = vmul.f32 1.0, %v793
    %v795 = vmul.f32 %v696, %v749
    %v796 = vmul.f32 %v698, %v764
    %v797 = vmul.f32 %v700, %v779
    %v798 = vmul.f32 %v702, %v794
    %799 = vst [vmem:[#allocation11] sm:$0xff] %v795
    %800 = vst [vmem:[#allocation11 + $0x18] sm:$0xff] %v796
    %801 = vst [vmem:[#allocation11 + $0x30] sm:$0xff] %v797
    %802 = vst [vmem:[#allocation11 + $0x48] sm:$0xff] %v798
    %v803 = vmul.f32 %v708, %v749
    %v804 = vmul.f32 %v710, %v764
    %v805 = vmul.f32 %v712, %v779
    %v806 = vmul.f32 %v714, %v794
    %807 = vst [vmem:[#allocation11 + $0x8] sm:$0xff] %v803
    %808 = vst [vmem:[#allocation11 + $0x20] sm:$0xff] %v804
    %809 = vst [vmem:[#allocation11 + $0x38] sm:$0xff] %v805
    %810 = vst [vmem:[#allocation11 + $0x50] sm:$0xff] %v806
    %v811 = vmul.f32 %v720, %v749
    %v812 = vmul.f32 %v722, %v764
    %v813 = vmul.f32 %v724, %v779
    %v814 = vmul.f32 %v726, %v794
    %815 = vst [vmem:[#allocation11 + $0x10] sm:$0xff] %v811
    %816 = vst [vmem:[#allocation11 + $0x28] sm:$0xff] %v812
    %817 = vst [vmem:[#allocation11 + $0x40] sm:$0xff] %v813
    %818 = vst [vmem:[#allocation11 + $0x58] sm:$0xff] %v814
    // Predicated region
    $region50: #{tpu_custom_call.1} parent=1 // pred_check
      _
    $region51: #{tpu_custom_call.1} parent=1 // pred_check_branch
      %820 = sbr.rel (0) target = $region53
    $region52: #{tpu_custom_call.1} parent=1 // pred_region
      %822 = vsyncadd [#allocation4], 0
      %s823 = sshll.u32 [#allocation11], 4
      %s824 = int_to_ptr.vmem [resolvable:$true] %s823
      %s825 = sshll.u32 %s7, 4
      %s826 = int_to_ptr.hbm [resolvable:$true] %s825
      %831 = dma.vmem_to_hbm [thread:$0]  %s824, 1536, %s826, [#allocation4], 384, 384, 24
    $region53: #{tpu_custom_call.1} parent=1 // pred_fallthru
      _
    // Predicated region
    $region54: #{tpu_custom_call.1} parent=1 // pred_check
      _
    $region55: #{tpu_custom_call.1} parent=1 // pred_check_branch
      %833 = sbr.rel (0) target = $region57
    $region56: #{tpu_custom_call.1} parent=1 // pred_region
      %835 = dma.done [#allocation4], 1536
    $region57: #{tpu_custom_call.1} parent=1 // pred_fallthru
      _
    %836 = vsyncpa [#allocation3], 1
    %837 = vsyncpa [#allocation6], 1
    %838 = vsyncpa [#allocation9], 1
    %839 = vsyncpa [#allocation4], 1

</llo_original>
